<compile_context>
chip_gen: v6e
topology: v6e:2x2x1
jax: 0.10.0
libtpu: 0.0.40
codegen_flags: <defaults>
</compile_context>

<pallas_src>
import functools

import jax
import jax.numpy as jnp
from jax.experimental import pallas as pl
from jax.experimental.pallas import tpu as pltpu

_MiB = 1024 * 1024


# ----------------------------------------------------------------------------
# Kernels
# ----------------------------------------------------------------------------
def _softmax_kernel(x_ref, o_ref, *, log_probs: bool):
    """Single-pass row-wise (log_)softmax; each block holds full-vocab rows.

    x_ref: (TM, V) tile in VMEM, native logits dtype (f32 / bf16 / ...).
    o_ref: (TM, V) tile in VMEM, output dtype.
    """
    x = x_ref[...]                                           # native dtype
    # max is exact / monotone in the native dtype; only the (TM,1) result is f32
    m = jnp.max(x, axis=-1, keepdims=True).astype(jnp.float32)
    e = jnp.exp(x.astype(jnp.float32) - m)                   # one f32 tile temp
    denom = jnp.sum(e, axis=-1, keepdims=True)
    if log_probs:
        # log_softmax = x - (m + log(sum(exp(x - m))))  -- single per-row const
        c = m + jnp.log(denom)
        o_ref[...] = (x.astype(jnp.float32) - c).astype(o_ref.dtype)
    else:
        # exact reciprocal keeps row sums == 1 to f32 precision
        o_ref[...] = (e * pl.reciprocal(denom, approx=False)).astype(o_ref.dtype)


def _lse_kernel(x_ref, lse_ref, m_sc, l_sc, *, tv: int, vocab: int, ragged: bool):
    """Blocked pass 1: online logsumexp over vocab blocks (accumulator in VMEM)."""
    j = pl.program_id(1)

    @pl.when(j == 0)
    def _():
        m_sc[...] = jnp.full_like(m_sc, -jnp.inf)
        l_sc[...] = jnp.zeros_like(l_sc)

    x = x_ref[...]
    if ragged:
        # Mask columns past the true vocab in the last (partial) block.
        col = jax.lax.broadcasted_iota(jnp.int32, x.shape, 1) + j * tv
        x = jnp.where(col < vocab, x, jnp.array(-jnp.inf, x.dtype))

    m_blk = jnp.max(x, axis=-1, keepdims=True).astype(jnp.float32)
    m_new = jnp.maximum(m_sc[...], m_blk)
    l_sc[...] = (l_sc[...] * jnp.exp(m_sc[...] - m_new)
                 + jnp.sum(jnp.exp(x.astype(jnp.float32) - m_new),
                           axis=-1, keepdims=True))
    m_sc[...] = m_new

    @pl.when(j == pl.num_programs(1) - 1)
    def _():
        lse_ref[...] = m_sc[...] + jnp.log(l_sc[...])


def _apply_lse_kernel(x_ref, lse_ref, o_ref, *, log_probs: bool):
    """Blocked pass 2: normalize a (TM, TV) logits block with per-row LSE."""
    shifted = x_ref[...].astype(jnp.float32) - lse_ref[...]
    out = shifted if log_probs else jnp.exp(shifted)
    o_ref[...] = out.astype(o_ref.dtype)


# ----------------------------------------------------------------------------
# Tiling helpers
# ----------------------------------------------------------------------------
def _vmem_capacity_bytes() -> int:
    """Best-effort per-core VMEM capacity query."""
    try:
        return int(pltpu.get_tpu_info().vmem_capacity_bytes)
    except Exception:
        # Conservative floor (v7x per-TC VMEM).  On v5e/v6e (128 MiB) this only
        # makes tiles a bit smaller; tiles are capped well below it anyway.
        return 64 * _MiB


def _row_align(dtype) -> int:
    """Packed-sublane row alignment: 8 for f32, 16 for bf16, 32 for int8/fp8."""
    return max(8, 32 // jnp.dtype(dtype).itemsize)


def _round_down(x: int, m: int) -> int:
    return max((int(x) // m) * m, m)


# ----------------------------------------------------------------------------
# Wrapper
# ----------------------------------------------------------------------------
def get_normalized_probs(logits: jax.Array, log_probs: bool, *,
                         out_dtype=None,
                         force_blocked: bool = False,
                         row_block=None, vocab_block=None) -> jax.Array:
    """Pallas equivalent of FairseqDecoder.get_normalized_probs' dense path.

    Args:
      logits: (batch, tgt_len, vocab), any float dtype (kept native in HBM).
      log_probs: if True return log_softmax, else softmax (over last dim).
      out_dtype: output dtype; None (default) follows the input dtype
        (HBM-byte saver).  Pass jnp.float32 for torch `.float()` semantics.
      force_blocked / row_block / vocab_block: testing hooks for the
        vocab-blocked huge-vocab fallback.
    """
    if out_dtype is None:
        out_dtype = logits.dtype
    b, t, v = logits.shape
    rows = b * t
    x2d = logits.reshape(rows, v)                 # metadata-only reshape

    in_bytes = jnp.dtype(logits.dtype).itemsize
    out_bytes = jnp.dtype(out_dtype).itemsize
    align = _row_align(logits.dtype)

    vmem_cap = _vmem_capacity_bytes()
    fit_budget = int(vmem_cap * 0.8)              # headroom for compiler internals
    per_buffer_cap = 8 * _MiB                     # ~85%+ of HBM roofline already

    # double-buffered input + output tiles + ~2 tile-sized f32 temps of margin
    per_row = v * (2 * in_bytes + 2 * out_bytes + 8)

    cost = pl.CostEstimate(
        flops=5 * rows * v,                       # sub/sum/mul/log per element
        transcendentals=rows * v,                 # one exp per element
        bytes_accessed=rows * v * (in_bytes + out_bytes),
    )

    # NOTE: rows that are entirely -inf produce NaN/-inf outputs, matching the
    # torch reference behavior.
    use_blocked = force_blocked or (align * per_row > fit_budget)

    if not use_blocked:
        # -------- single-pass path: full vocab per block --------------------
        tm = min(per_buffer_cap // max(v * in_bytes, 1),
                 fit_budget // max(per_row, 1),
                 8192)
        tm = _round_down(tm, align)
        if rows <= tm:
            tm = rows                             # one full block (any row count)
        grid = (pl.cdiv(rows, tm),)
        vmem_limit = int(min(max(tm * per_row + 4 * _MiB, 16 * _MiB),
                             int(vmem_cap * 0.9)))

        out2d = pl.pallas_call(
            functools.partial(_softmax_kernel, log_probs=log_probs),
            out_shape=jax.ShapeDtypeStruct((rows, v), out_dtype),
            grid_spec=pltpu.PrefetchScalarGridSpec(
                num_scalar_prefetch=0,
                grid=grid,
                in_specs=[pl.BlockSpec((tm, v), lambda i: (i, 0))],
                out_specs=pl.BlockSpec((tm, v), lambda i: (i, 0)),
            ),
            compiler_params=pltpu.CompilerParams(
                # "parallel" lets the row axis shard across both v7x TensorCores.
                dimension_semantics=("parallel",),
                vmem_limit_bytes=vmem_limit,
            ),
            cost_estimate=cost,
        )(x2d)
        return out2d.reshape(b, t, v)

    # -------- vocab-blocked two-pass fallback (huge vocab / v7x 64 MiB) -----
    tm = row_block if row_block is not None else 256
    tm = _round_down(min(int(tm), max(rows, align)), align)
    if rows <= tm:
        tm = rows
    if vocab_block is not None:
        tv = int(vocab_block)
    else:
        tv = min(4096, _round_down(4 * _MiB // max(tm * in_bytes, 1), 128))
    tv = max(128, (tv // 128) * 128)
    tv = min(tv, max(128, (v // 128) * 128)) if v >= 128 else v
    ragged = (v % tv) != 0
    grid2 = (pl.cdiv(rows, tm), pl.cdiv(v, tv))

    blk_needed = tm * tv * (2 * in_bytes + 2 * out_bytes + 8) + 4 * _MiB
    blk_vmem_limit = int(min(max(blk_needed, 16 * _MiB), int(vmem_cap * 0.9)))

    # Pass 1: per-row logsumexp (online max/sum accumulators in VMEM scratch).
    lse = pl.pallas_call(
        functools.partial(_lse_kernel, tv=tv, vocab=v, ragged=ragged),
        out_shape=jax.ShapeDtypeStruct((rows, 1), jnp.float32),
        grid_spec=pltpu.PrefetchScalarGridSpec(
            num_scalar_prefetch=0,
            grid=grid2,
            in_specs=[pl.BlockSpec((tm, tv), lambda i, j: (i, j))],
            out_specs=pl.BlockSpec((tm, 1), lambda i, j: (i, 0)),
            scratch_shapes=[pltpu.VMEM((tm, 1), jnp.float32),
                            pltpu.VMEM((tm, 1), jnp.float32)],
        ),
        compiler_params=pltpu.CompilerParams(
            dimension_semantics=("parallel", "arbitrary"),
            vmem_limit_bytes=blk_vmem_limit,
        ),
    )(x2d)

    # Pass 2: normalize each logits block with the per-row LSE.
    out2d = pl.pallas_call(
        functools.partial(_apply_lse_kernel, log_probs=log_probs),
        out_shape=jax.ShapeDtypeStruct((rows, v), out_dtype),
        grid_spec=pltpu.PrefetchScalarGridSpec(
            num_scalar_prefetch=0,
            grid=grid2,
            in_specs=[pl.BlockSpec((tm, tv), lambda i, j: (i, j)),
                      pl.BlockSpec((tm, 1), lambda i, j: (i, 0))],
            out_specs=pl.BlockSpec((tm, tv), lambda i, j: (i, j)),
        ),
        compiler_params=pltpu.CompilerParams(
            dimension_semantics=("parallel", "parallel"),
            vmem_limit_bytes=blk_vmem_limit,
        ),
        cost_estimate=cost,
    )(x2d, lse)
    return out2d.reshape(b, t, v)


# ----------------------------------------------------------------------------
# Module port
# ----------------------------------------------------------------------------
class FairseqDecoderPallas:
    """JAX/Pallas port of fairseq's FairseqDecoder base class."""

    def __init__(self, dictionary):
        self.dictionary = dictionary
        self.adaptive_softmax = None  # base class never sets one

    def forward(self, prev_output_tokens, encoder_out):
        # Base class defines no forward computation.
        raise NotImplementedError

    def get_normalized_probs(self, net_output, log_probs, sample=None,
                             out_dtype=jnp.float32):
        # TODO(synk): adaptive_softmax branch has no Pallas equivalent here
        # (the base class never instantiates one); only the dense
        # softmax/log_softmax path is implemented.
        logits = net_output[0]
        # Default out_dtype=f32 matches torch's `.float()`; callers may pass
        # out_dtype=None to follow the input dtype (halves output HBM bytes).
        return get_normalized_probs(logits, log_probs, out_dtype=out_dtype)

    def max_positions(self):
        return 1000000.0

    def upgrade_state_dict(self, state_dict):
        return state_dict


# ----------------------------------------------------------------------------
# Demo / correctness check
# ----------------------------------------------------------------------------
if __name__ == "__main__":
    key = jax.random.PRNGKey(0)

    batch, tgt_len, src_len, vocab = 2, 8, 8, 256

    k_logits, k_attn = jax.random.split(key)
    logits = jax.random.normal(k_logits, (batch, tgt_len, vocab), dtype=jnp.float32)
    attn = jax.random.normal(k_attn, (batch, tgt_len, src_len), dtype=jnp.float32)
    net_output = (logits, attn)

    decoder = FairseqDecoderPallas(dictionary=None)

    # 1) Default module path: torch `.float()` semantics (f32 out), single-pass.
    log_p = decoder.get_normalized_probs(net_output, log_probs=True)
    p = decoder.get_normalized_probs(net_output, log_probs=False)
    jax.block_until_ready((log_p, p))

    ref_log_p = jax.nn.log_softmax(logits, axis=-1)
    ref_p = jax.nn.softmax(logits, axis=-1)
    assert log_p.shape == (batch, tgt_len, vocab) and log_p.dtype == jnp.float32
    assert p.shape == (batch, tgt_len, vocab) and p.dtype == jnp.float32
    assert jnp.allclose(log_p, ref_log_p, atol=1e-5, rtol=1e-5)
    assert jnp.allclose(p, ref_p, atol=1e-5, rtol=1e-5)
    assert jnp.allclose(jnp.sum(p, axis=-1), 1.0, atol=1e-5)

    # 2) bf16 in -> bf16 out (default out_dtype follows input; HBM-byte saver).
    logits_bf16 = logits.astype(jnp.bfloat16)
    log_p_bf16 = get_normalized_probs(logits_bf16, log_probs=True)
    jax.block_until_ready(log_p_bf16)
    assert log_p_bf16.dtype == jnp.bfloat16
    ref_bf16 = jax.nn.log_softmax(logits_bf16.astype(jnp.float32), axis=-1)
    assert jnp.allclose(log_p_bf16.astype(jnp.float32), ref_bf16,
                        atol=5e-2, rtol=2e-2)

    # 3) Vocab-blocked online-softmax fallback (huge-vocab / v7x path),
    #    forced at small shapes so the accumulator + finalize logic runs.
    log_p_blk = get_normalized_probs(logits, True, out_dtype=jnp.float32,
                                     force_blocked=True, row_block=8,
                                     vocab_block=128)
    p_blk = get_normalized_probs(logits, False, out_dtype=jnp.float32,
                                 force_blocked=True, row_block=8,
                                 vocab_block=128)
    jax.block_until_ready((log_p_blk, p_blk))
    assert jnp.allclose(log_p_blk, ref_log_p, atol=1e-4, rtol=1e-5)
    assert jnp.allclose(p_blk, ref_p, atol=1e-4, rtol=1e-5)
    assert jnp.allclose(jnp.sum(p_blk, axis=-1), 1.0, atol=1e-4)

    # 4) Ragged-vocab blocked path (masked last vocab block).
    v_rag = 320
    logits_rag = jax.random.normal(jax.random.PRNGKey(1),
                                   (batch, tgt_len, v_rag), dtype=jnp.float32)
    log_p_rag = get_normalized_probs(logits_rag, True, out_dtype=jnp.float32,
                                     force_blocked=True, row_block=8,
                                     vocab_block=128)
    jax.block_until_ready(log_p_rag)
    assert jnp.allclose(log_p_rag, jax.nn.log_softmax(logits_rag, axis=-1),
                        atol=1e-4, rtol=1e-5)

    print("KERNEL_OK")
</pallas_src>

<mosaic_0001>
module attributes {stable_mosaic.version = 11 : i64} {
  func.func @_softmax_kernel(%arg0: i32, %arg1: memref<16x256xf32, #tpu.memory_space<vmem>>, %arg2: memref<16x256xf32, #tpu.memory_space<vmem>>) attributes {dimension_semantics = [#tpu.dimension_semantics<parallel>], iteration_bounds = array<i64: 1>, scalar_prefetch = 0 : i64, scratch_operands = 0 : i64, tpu.core_type = #tpu.core_type<tc>, window_params = [{transform_indices = @transform_0, window_bounds = array<i64: 16, 256>}, {transform_indices = @transform_1, window_bounds = array<i64: 16, 256>}]} {
    %c0 = arith.constant 0 : index
    %c0_0 = arith.constant 0 : index
    %0 = vector.load %arg1[%c0, %c0_0] : memref<16x256xf32, #tpu.memory_space<vmem>>, vector<16x256xf32>
    %cst = arith.constant dense<0xFF800000> : vector<16xf32>
    %1 = vector.multi_reduction <maximumf>, %0, %cst [1] : vector<16x256xf32> to vector<16xf32>
    %2 = vector.shape_cast %1 : vector<16xf32> to vector<16x1xf32>
    %3 = vector.broadcast %2 : vector<16x1xf32> to vector<16x256xf32>
    %4 = arith.subf %0, %3 : vector<16x256xf32>
    %5 = math.exp %4 : vector<16x256xf32>
    %cst_1 = arith.constant dense<0.000000e+00> : vector<16xf32>
    %6 = vector.multi_reduction <add>, %5, %cst_1 [1] : vector<16x256xf32> to vector<16xf32>
    %7 = vector.shape_cast %6 : vector<16xf32> to vector<16x1xf32>
    %8 = math.log %7 : vector<16x1xf32>
    %9 = arith.addf %2, %8 : vector<16x1xf32>
    %10 = vector.broadcast %9 : vector<16x1xf32> to vector<16x256xf32>
    %11 = arith.subf %0, %10 : vector<16x256xf32>
    %c0_2 = arith.constant 0 : index
    %c0_3 = arith.constant 0 : index
    %12 = vector.load %arg2[%c0_2, %c0_3] : memref<16x256xf32, #tpu.memory_space<vmem>>, vector<16x256xf32>
    tpu.vector_store %arg2[%c0_2, %c0_3], %11 {strides = array<i32>} : memref<16x256xf32, #tpu.memory_space<vmem>>, vector<16x256xf32>,
    return
  }
  func.func @transform_0(%arg0: i32) -> (i32, i32) {
    %c0_i32 = arith.constant 0 : i32
    %c0_i32_0 = arith.constant 0 : i32
    return %arg0, %c0_i32 : i32, i32
  }
  func.func @transform_1(%arg0: i32) -> (i32, i32) {
    %c0_i32 = arith.constant 0 : i32
    %c0_i32_0 = arith.constant 0 : i32
    return %arg0, %c0_i32 : i32, i32
  }
}

</mosaic_0001>

<llo_original>
// kernel: tpu_custom_call.1
$region0: #{tpu_custom_call.1}
  #allocation0 [shape = 'u32[]', space=smem, size = 0x4, offset = 0x4, fixed_abs, tag = 'smem constant byte address 0x4 - core index']
  #allocation1 [shape = 'u32[144,128]{1,0:T(1,128)}', space=vmem, size = 0x12000, scoped, tag = 'internal scratch']
  %s0 = inlined_call_operand.hbm [shape: f32[16,256], index: 0, kind: input, shape index: {}]
  %s1 = inlined_call_operand.hbm [shape: f32[16,256], index: 1, kind: output, shape index: {}]
  %s2 = sld [smem:[#allocation0]]
  $region18: #{tpu_custom_call.1} parent=0
    _
  %s4 = ssub.s32 1, %s2
  %s5 = scalar_select 0, %s4, %s2
  $region1: #{tpu_custom_call.1} parent=0
    #allocation2 [shape = 'u8[16384]{0}', space=vmem, size = 0x4000, scoped, tag = 'input window, operand 0, single buffered']
    #allocation3 [shape = 's32[1]{0}', space=sflag, size = 0x4, scoped, tag = 'scoped memory for tpu_custom_call.1']
    #allocation4 [shape = 's32[1]{0}', space=sflag, size = 0x4, scoped, tag = 'scoped memory for tpu_custom_call.1']
    #allocation5 [shape = 'u8[16384]{0}', space=vmem, size = 0x4000, scoped, tag = 'output window, operand 0, single buffered']
    %6 = vsyncpa [#allocation3], 0
    %7 = vsyncpa [#allocation4], 0
    // Predicated region
    $region2: #{tpu_custom_call.1} parent=1 // pred_check
      _
    $region3: #{tpu_custom_call.1} parent=1 // pred_check_branch
      %9 = sbr.rel (0) target = $region5
    $region4: #{tpu_custom_call.1} parent=1 // pred_region
      %s11 = ssub.s32 512, 512
      %12 = vsyncadd [#allocation3], %s11
      %s13 = sshll.u32 [#allocation2], 4
      %s14 = int_to_ptr.vmem [resolvable:$true] %s13
      %19 = dma.hbm_to_vmem [thread:$0]  %s0, 512, %s14, [#allocation3], 256, 256, 16
    $region5: #{tpu_custom_call.1} parent=1 // pred_fallthru
      _
    // Predicated region
    $region6: #{tpu_custom_call.1} parent=1 // pred_check
      _
    $region7: #{tpu_custom_call.1} parent=1 // pred_check_branch
      %21 = sbr.rel (0) target = $region9
    $region8: #{tpu_custom_call.1} parent=1 // pred_region
      %22 = dma.done [#allocation3], 512
    $region9: #{tpu_custom_call.1} parent=1 // pred_fallthru
      _
    %v23 = vld [vmem:[#allocation2] sm:$0xff]
    %v24 = vld [vmem:[#allocation2 + $0x8] sm:$0xff]
    %v25 = vld [vmem:[#allocation2 + $0x10] sm:$0xff]
    %v26 = vld [vmem:[#allocation2 + $0x18] sm:$0xff]
    %v27 = vmax.f32 %v23, %v24
    %28 = vmax.xlane.f32.xlu0 %v27
    %v29 = vpop.xlane.xlu0 %28
    %v30 = vmax.f32 %v25, %v26
    %31 = vmax.xlane.f32.xlu0 %v30
    %v32 = vpop.xlane.xlu0 %31
    %v33 = vsub.f32 %v23, %v29
    %v34 = vsub.f32 %v24, %v29
    %v35 = vsub.f32 %v25, %v32
    %v36 = vsub.f32 %v26, %v32
    %v37 = vmul.f32 %v33, 1.442695
    %v38 = vpow.pop %v37
    %v39 = vmul.f32 %v34, 1.442695
    %v40 = vpow.pop %v39
    %v41 = vmul.f32 %v35, 1.442695
    %v42 = vpow.pop %v41
    %v43 = vmul.f32 %v36, 1.442695
    %v44 = vpow.pop %v43
    %v45 = vadd.f32 %v38, %v40
    %46 = vadd.xlane.f32.xlu0 %v45
    %v47 = vpop.xlane.xlu0 %46
    %v48 = vadd.f32 %v42, %v44
    %49 = vadd.xlane.f32.xlu0 %v48
    %v50 = vpop.xlane.xlu0 %49
    %v51 = vlog2.pop %v47
    %v52 = vmul.f32 %v51, 0.6931472
    %v53 = vlog2.pop %v50
    %v54 = vmul.f32 %v53, 0.6931472
    %v55 = vadd.f32 %v29, %v52
    %v56 = vadd.f32 %v32, %v54
    %v57 = vsub.f32 %v23, %v55
    %v58 = vsub.f32 %v24, %v55
    %v59 = vsub.f32 %v25, %v56
    %v60 = vsub.f32 %v26, %v56
    %61 = vst [vmem:[#allocation5] sm:$0xff] %v57
    %62 = vst [vmem:[#allocation5 + $0x8] sm:$0xff] %v58
    %63 = vst [vmem:[#allocation5 + $0x10] sm:$0xff] %v59
    %64 = vst [vmem:[#allocation5 + $0x18] sm:$0xff] %v60
    // Predicated region
    $region10: #{tpu_custom_call.1} parent=1 // pred_check
      _
    $region11: #{tpu_custom_call.1} parent=1 // pred_check_branch
      %66 = sbr.rel (0) target = $region13
    $region12: #{tpu_custom_call.1} parent=1 // pred_region
      %s68 = ssub.s32 512, 512
      %69 = vsyncadd [#allocation4], %s68
      %s70 = sshll.u32 [#allocation5], 4
      %s71 = int_to_ptr.vmem [resolvable:$true] %s70
      %76 = dma.vmem_to_hbm [thread:$0]  %s71, 512, %s1, [#allocation4], 256, 256, 16
    $region13: #{tpu_custom_call.1} parent=1 // pred_fallthru
      _
    // Predicated region
    $region14: #{tpu_custom_call.1} parent=1 // pred_check
      _
    $region15: #{tpu_custom_call.1} parent=1 // pred_check_branch
      %78 = sbr.rel (0) target = $region17
    $region16: #{tpu_custom_call.1} parent=1 // pred_region
      %79 = dma.done [#allocation4], 512
    $region17: #{tpu_custom_call.1} parent=1 // pred_fallthru
      _
    %80 = vsyncpa [#allocation3], 1
    %81 = vsyncpa [#allocation4], 1

</llo_original>
